<compile_context>
chip_gen: v7x
topology: tpu7x:2x2x1
jax: 0.10.0
libtpu: 0.0.40
codegen_flags: <defaults>
</compile_context>

<pallas_src>
import functools

import jax
import jax.numpy as jnp
from jax.experimental import pallas as pl
from jax.experimental.pallas import tpu as pltpu


def _round_up(x, m):
    return (x + m - 1) // m * m


def mlp_kernel(x_ref, w1_ref, b1_ref, w2_ref, b2_ref, w3_ref, b3_ref, o_ref):
    # bf16 matmul operands (MXU-native on v6e/v7x), f32 accumulate; bias add and
    # ReLU stay f32 (friendly to v5e's f32-only VPU). All casts happen in-kernel
    # so the wrapper never does an extra HBM pass over x.
    bf = jnp.bfloat16
    x = x_ref[...].astype(bf)
    h = jnp.dot(x, w1_ref[...].astype(bf), preferred_element_type=jnp.float32)
    h = jnp.maximum(h + b1_ref[...], 0.0).astype(bf)
    h = jnp.dot(h, w2_ref[...].astype(bf), preferred_element_type=jnp.float32)
    h = jnp.maximum(h + b2_ref[...], 0.0).astype(bf)
    out = jnp.dot(h, w3_ref[...].astype(bf), preferred_element_type=jnp.float32)
    o_ref[...] = (out + b3_ref[...]).astype(o_ref.dtype)


def _choose_block_b(B, block_b):
    """Batch tile: multiple of 16, <= B, and small enough for a >=2-step grid."""
    if B <= 16:
        return B                                   # single exact block
    bb = _round_up(min(block_b, B), 16)
    # Ensure at least 2 grid steps so v7x's second TensorCore gets work
    # (costs at most one extra ~0.35us step on single-TC v5e/v6e).
    bb = min(bb, _round_up(pl.cdiv(B, 2), 16))
    return max(bb, 16)


@functools.partial(jax.jit, static_argnames=("block_b",))
def basic_classifier_forward(x, params, *, block_b=1024):
    w1, b1, w2, b2, w3, b3 = params
    B, d_in = x.shape
    h1_dim, h2_dim, d_out = w1.shape[1], w2.shape[1], w3.shape[1]

    bb = _choose_block_b(B, block_b)
    grid = (pl.cdiv(B, bb),)   # partial last block is masked by Pallas

    # Generous VMEM footprint estimate (tiles, resident weights, in-kernel bf16
    # copies, f32/bf16 intermediates); 2x margin for compiler-internal scratch.
    est = (
        2 * bb * d_in * 4                                   # x tile (f32, 2 bufs)
        + 2 * bb * d_out * 4                                # out tile (f32, 2 bufs)
        + (d_in * h1_dim + h1_dim * h2_dim + h2_dim * d_out) * (4 + 2)  # W f32 + bf16
        + (h1_dim + h2_dim + d_out) * 4                     # biases
        + bb * d_in * 2                                     # x bf16 copy
        + bb * (h1_dim + h2_dim) * (4 + 2)                  # h1/h2 f32 + bf16
        + bb * d_out * 4                                    # f32 out temp
    )
    vmem_limit = int(min(max(2 * est, 16 * 1024 * 1024), 48 * 1024 * 1024))

    # Constant-index operands: single-buffered (no re-DMA across the grid anyway).
    const = lambda shape: pl.BlockSpec(shape, lambda i: (0, 0),
                                       pipeline_mode=pl.Buffered(1))

    return pl.pallas_call(
        mlp_kernel,
        out_shape=jax.ShapeDtypeStruct((B, d_out), jnp.float32),
        grid_spec=pl.GridSpec(
            grid=grid,
            in_specs=[
                pl.BlockSpec((bb, d_in), lambda i: (i, 0)),       # x tile
                const((d_in, h1_dim)), const((1, h1_dim)),        # layer 1
                const((h1_dim, h2_dim)), const((1, h2_dim)),      # layer 2
                const((h2_dim, d_out)), const((1, d_out)),        # layer 3
            ],
            out_specs=pl.BlockSpec((bb, d_out), lambda i: (i, 0)),
        ),
        compiler_params=pltpu.CompilerParams(
            dimension_semantics=("parallel",),
            vmem_limit_bytes=vmem_limit,
        ),
    )(x, w1, b1, w2, b2, w3, b3)


def init_params(key, input_dim, output_dim):
    """Deterministic init mirroring nn.Linear shapes (weights stored [in, out])."""
    dims = [(input_dim, 128), (128, 64), (64, output_dim)]
    params = []
    for fan_in, fan_out in dims:
        kw, kb, key = jax.random.split(key, 3)
        bound = 1.0 / jnp.sqrt(fan_in)
        w = jax.random.uniform(kw, (fan_in, fan_out), jnp.float32, -bound, bound)
        b = jax.random.uniform(kb, (1, fan_out), jnp.float32, -bound, bound)
        params += [w, b]
    return tuple(params)


def reference_forward_f32(x, params):
    w1, b1, w2, b2, w3, b3 = params
    h = jnp.maximum(x @ w1 + b1, 0.0)
    h = jnp.maximum(h @ w2 + b2, 0.0)
    return h @ w3 + b3


def reference_forward_bf16(x, params):
    """Mirror of the kernel's precision path (bf16 operands, f32 accumulate)."""
    w1, b1, w2, b2, w3, b3 = params
    bf = jnp.bfloat16
    h = jnp.dot(x.astype(bf), w1.astype(bf), preferred_element_type=jnp.float32) + b1
    h = jnp.maximum(h, 0.0).astype(bf)
    h = jnp.dot(h, w2.astype(bf), preferred_element_type=jnp.float32) + b2
    h = jnp.maximum(h, 0.0).astype(bf)
    return jnp.dot(h, w3.astype(bf), preferred_element_type=jnp.float32) + b3


if __name__ == "__main__":
    key = jax.random.PRNGKey(0)
    kx, kp = jax.random.split(key)

    batch, input_dim, output_dim = 20, 32, 10
    x = jax.random.normal(kx, (batch, input_dim), jnp.float32)
    params = init_params(kp, input_dim, output_dim)

    # Default block_b; with B=20 the tile chooser picks bb=16, giving a 2-step
    # parallel grid (dual-TC path on v7x) and a masked partial last block.
    out = basic_classifier_forward(x, params)
    out = jax.block_until_ready(out)

    ref_bf16 = reference_forward_bf16(x, params)
    ref_f32 = reference_forward_f32(x, params)

    assert out.shape == (batch, output_dim)
    # Tight check vs. a reference using the same bf16-operand / f32-accumulate path.
    assert jnp.allclose(out, ref_bf16, atol=2e-3, rtol=2e-3)
    # Looser check vs. the pure-f32 reference (bf16 operands lose mantissa bits).
    assert jnp.allclose(out, ref_f32, atol=5e-2, rtol=5e-2)

    print("KERNEL_OK")
</pallas_src>

<mosaic_0001>
module attributes {stable_mosaic.version = 11 : i64} {
  func.func @mlp_kernel(%arg0: i32, %arg1: memref<16x32xf32, #tpu.memory_space<vmem>>, %arg2: memref<32x128xf32, #tpu.memory_space<vmem>>, %arg3: memref<1x128xf32, #tpu.memory_space<vmem>>, %arg4: memref<128x64xf32, #tpu.memory_space<vmem>>, %arg5: memref<1x64xf32, #tpu.memory_space<vmem>>, %arg6: memref<64x10xf32, #tpu.memory_space<vmem>>, %arg7: memref<1x10xf32, #tpu.memory_space<vmem>>, %arg8: memref<16x10xf32, #tpu.memory_space<vmem>>) attributes {dimension_semantics = [#tpu.dimension_semantics<parallel>], iteration_bounds = array<i64: 2>, scalar_prefetch = 0 : i64, scratch_operands = 0 : i64, tpu.core_type = #tpu.core_type<tc>, window_params = [{transform_indices = @transform_0, window_bounds = array<i64: 16, 32>}, {pipeline_mode = #tpu.pipeline_mode<synchronous>, transform_indices = @transform_1, window_bounds = array<i64: 32, 128>}, {pipeline_mode = #tpu.pipeline_mode<synchronous>, transform_indices = @transform_2, window_bounds = array<i64: 1, 128>}, {pipeline_mode = #tpu.pipeline_mode<synchronous>, transform_indices = @transform_3, window_bounds = array<i64: 128, 64>}, {pipeline_mode = #tpu.pipeline_mode<synchronous>, transform_indices = @transform_4, window_bounds = array<i64: 1, 64>}, {pipeline_mode = #tpu.pipeline_mode<synchronous>, transform_indices = @transform_5, window_bounds = array<i64: 64, 10>}, {pipeline_mode = #tpu.pipeline_mode<synchronous>, transform_indices = @transform_6, window_bounds = array<i64: 1, 10>}, {transform_indices = @transform_7, window_bounds = array<i64: 16, 10>}]} {
    %c0 = arith.constant 0 : index
    %c0_0 = arith.constant 0 : index
    %0 = vector.load %arg1[%c0, %c0_0] : memref<16x32xf32, #tpu.memory_space<vmem>>, vector<16x32xf32>
    %1 = arith.truncf %0 : vector<16x32xf32> to vector<16x32xbf16>
    %c0_1 = arith.constant 0 : index
    %c0_2 = arith.constant 0 : index
    %2 = vector.load %arg2[%c0_1, %c0_2] : memref<32x128xf32, #tpu.memory_space<vmem>>, vector<32x128xf32>
    %3 = arith.truncf %2 : vector<32x128xf32> to vector<32x128xbf16>
    %cst = arith.constant dense<0.000000e+00> : vector<16x128xf32>
    %4 = tpu.matmul %1, %3, %cst {dimension_numbers = #tpu.dot_dimension_numbers<[1], [0], [0], [1], [0, 0, 1, 1], [], []>} : vector<16x32xbf16>, vector<32x128xbf16>, vector<16x128xf32> -> vector<16x128xf32>
    %c0_3 = arith.constant 0 : index
    %c0_4 = arith.constant 0 : index
    %5 = vector.load %arg3[%c0_3, %c0_4] : memref<1x128xf32, #tpu.memory_space<vmem>>, vector<1x128xf32>
    %6 = vector.broadcast %5 : vector<1x128xf32> to vector<16x128xf32>
    %7 = arith.addf %4, %6 : vector<16x128xf32>
    %cst_5 = arith.constant 0.000000e+00 : f32
    %8 = vector.broadcast %cst_5 : f32 to vector<16x128xf32>
    %9 = arith.maximumf %7, %8 : vector<16x128xf32>
    %10 = arith.truncf %9 : vector<16x128xf32> to vector<16x128xbf16>
    %c0_6 = arith.constant 0 : index
    %c0_7 = arith.constant 0 : index
    %11 = vector.load %arg4[%c0_6, %c0_7] : memref<128x64xf32, #tpu.memory_space<vmem>>, vector<128x64xf32>
    %12 = arith.truncf %11 : vector<128x64xf32> to vector<128x64xbf16>
    %cst_8 = arith.constant dense<0.000000e+00> : vector<16x64xf32>
    %13 = tpu.matmul %10, %12, %cst_8 {dimension_numbers = #tpu.dot_dimension_numbers<[1], [0], [0], [1], [0, 0, 1, 1], [], []>} : vector<16x128xbf16>, vector<128x64xbf16>, vector<16x64xf32> -> vector<16x64xf32>
    %c0_9 = arith.constant 0 : index
    %c0_10 = arith.constant 0 : index
    %14 = vector.load %arg5[%c0_9, %c0_10] : memref<1x64xf32, #tpu.memory_space<vmem>>, vector<1x64xf32>
    %15 = vector.broadcast %14 : vector<1x64xf32> to vector<16x64xf32>
    %16 = arith.addf %13, %15 : vector<16x64xf32>
    %cst_11 = arith.constant 0.000000e+00 : f32
    %17 = vector.broadcast %cst_11 : f32 to vector<16x64xf32>
    %18 = arith.maximumf %16, %17 : vector<16x64xf32>
    %19 = arith.truncf %18 : vector<16x64xf32> to vector<16x64xbf16>
    %c0_12 = arith.constant 0 : index
    %c0_13 = arith.constant 0 : index
    %20 = vector.load %arg6[%c0_12, %c0_13] : memref<64x10xf32, #tpu.memory_space<vmem>>, vector<64x10xf32>
    %21 = arith.truncf %20 : vector<64x10xf32> to vector<64x10xbf16>
    %cst_14 = arith.constant dense<0.000000e+00> : vector<16x10xf32>
    %22 = tpu.matmul %19, %21, %cst_14 {dimension_numbers = #tpu.dot_dimension_numbers<[1], [0], [0], [1], [0, 0, 1, 1], [], []>} : vector<16x64xbf16>, vector<64x10xbf16>, vector<16x10xf32> -> vector<16x10xf32>
    %c0_15 = arith.constant 0 : index
    %c0_16 = arith.constant 0 : index
    %23 = vector.load %arg7[%c0_15, %c0_16] : memref<1x10xf32, #tpu.memory_space<vmem>>, vector<1x10xf32>
    %24 = vector.broadcast %23 : vector<1x10xf32> to vector<16x10xf32>
    %25 = arith.addf %22, %24 : vector<16x10xf32>
    %c0_17 = arith.constant 0 : index
    %c0_18 = arith.constant 0 : index
    %26 = vector.load %arg8[%c0_17, %c0_18] : memref<16x10xf32, #tpu.memory_space<vmem>>, vector<16x10xf32>
    tpu.vector_store %arg8[%c0_17, %c0_18], %25 {strides = array<i32>} : memref<16x10xf32, #tpu.memory_space<vmem>>, vector<16x10xf32>,
    return
  }
  func.func @transform_0(%arg0: i32) -> (i32, i32) {
    %c0_i32 = arith.constant 0 : i32
    %c0_i32_0 = arith.constant 0 : i32
    return %arg0, %c0_i32 : i32, i32
  }
  func.func @transform_1(%arg0: i32) -> (i32, i32) {
    %c0_i32 = arith.constant 0 : i32
    %c0_i32_0 = arith.constant 0 : i32
    %c0_i32_1 = arith.constant 0 : i32
    return %c0_i32, %c0_i32_0 : i32, i32
  }
  func.func @transform_2(%arg0: i32) -> (i32, i32) {
    %c0_i32 = arith.constant 0 : i32
    %c0_i32_0 = arith.constant 0 : i32
    %c0_i32_1 = arith.constant 0 : i32
    return %c0_i32, %c0_i32_0 : i32, i32
  }
  func.func @transform_3(%arg0: i32) -> (i32, i32) {
    %c0_i32 = arith.constant 0 : i32
    %c0_i32_0 = arith.constant 0 : i32
    %c0_i32_1 = arith.constant 0 : i32
    return %c0_i32, %c0_i32_0 : i32, i32
  }
  func.func @transform_4(%arg0: i32) -> (i32, i32) {
    %c0_i32 = arith.constant 0 : i32
    %c0_i32_0 = arith.constant 0 : i32
    %c0_i32_1 = arith.constant 0 : i32
    return %c0_i32, %c0_i32_0 : i32, i32
  }
  func.func @transform_5(%arg0: i32) -> (i32, i32) {
    %c0_i32 = arith.constant 0 : i32
    %c0_i32_0 = arith.constant 0 : i32
    %c0_i32_1 = arith.constant 0 : i32
    return %c0_i32, %c0_i32_0 : i32, i32
  }
  func.func @transform_6(%arg0: i32) -> (i32, i32) {
    %c0_i32 = arith.constant 0 : i32
    %c0_i32_0 = arith.constant 0 : i32
    %c0_i32_1 = arith.constant 0 : i32
    return %c0_i32, %c0_i32_0 : i32, i32
  }
  func.func @transform_7(%arg0: i32) -> (i32, i32) {
    %c0_i32 = arith.constant 0 : i32
    %c0_i32_0 = arith.constant 0 : i32
    return %arg0, %c0_i32 : i32, i32
  }
}

</mosaic_0001>

<llo_original>
// kernel: basic_classifier_forward.1
$region0: #{basic_classifier_forward.1}
  #allocation0 [shape = 'u32[]', space=smem, size = 0x4, offset = 0x4, fixed_abs, tag = 'smem constant byte address 0x4 - core index']
  #allocation1 [shape = 'u32[144,128]{1,0:T(1,128)}', space=vmem, size = 0x12000, scoped, tag = 'internal scratch']
  %s0 = inlined_call_operand.vmem [shape: f32[20,32], index: 0, kind: input, shape index: {}]
  %s1 = inlined_call_operand.vmem [shape: f32[32,128], index: 1, kind: input, shape index: {}]
  %s2 = inlined_call_operand.vmem [shape: f32[1,128], index: 2, kind: input, shape index: {}]
  %s3 = inlined_call_operand.vmem [shape: f32[128,64], index: 3, kind: input, shape index: {}]
  %s4 = inlined_call_operand.vmem [shape: f32[1,64], index: 4, kind: input, shape index: {}]
  %s5 = inlined_call_operand.vmem [shape: f32[64,10], index: 5, kind: input, shape index: {}]
  %s6 = inlined_call_operand.vmem [shape: f32[1,10], index: 6, kind: input, shape index: {}]
  %s7 = inlined_call_operand.vmem [shape: f32[20,10], index: 7, kind: output, shape index: {}]
  %s8 = sld [smem:[#allocation0]]
  $region109: #{basic_classifier_forward.1} parent=0
    _
  %s10 = ssub.s32 1, %s8
  %s11 = scalar_select 0, %s10, %s8
  $region1: #{basic_classifier_forward.1} parent=0
    #allocation2 [shape = 'u8[16384]{0}', space=vmem, size = 0x4000, scoped, tag = 'output window, operand 0']
    loop: start=0, step=1, limit=4
    $region2: #{basic_classifier_forward.1} parent=1 // loop_pre_header
      _
    $region3: #{basic_classifier_forward.1} parent=1 // loop_header
      %s13 = sphi 0, %s17
      %p14 = scmp.ge.s32.totalorder %s13, 4
      %s23 = sphi 0, %s25
      %s26 = sphi 0, %s23
      %s27 = sphi 0, %s26
      %s43 = sphi 0, %s27
      %s47 = sphi 0, %s47
      %s49 = sphi 0, %s47
      %s50 = sphi 0, %s49
      %s64 = sphi 0, %s50
      %s68 = sphi 0, %s68
      %s70 = sphi 0, %s68
      %s71 = sphi 0, %s70
      %s85 = sphi 0, %s71
      %s89 = sphi 0, %s89
      %s91 = sphi 0, %s89
      %s92 = sphi 0, %s91
      %s106 = sphi 0, %s92
      %s110 = sphi 0, %s110
      %s112 = sphi 0, %s110
      %s113 = sphi 0, %s112
      %s127 = sphi 0, %s113
      %s131 = sphi 0, %s131
      %s133 = sphi 0, %s131
      %s134 = sphi 0, %s133
      %s148 = sphi 0, %s134
      %s152 = sphi 0, %s152
      %s154 = sphi 0, %s152
      %s155 = sphi 0, %s154
      %s169 = sphi 0, %s155
      %s175 = sphi 0, %s177
      %s178 = sphi 0, %s175
      %s179 = sphi 0, %s178
      %s195 = sphi 0, %s179
    $region4: #{basic_classifier_forward.1} parent=1 // loop_header_branch
      %16 = sbr.rel (%p14) target = $region8
    $region5: #{basic_classifier_forward.1} parent=1 // loop_body
      %s18 = ssub.s32 %s13, 1
      %s19 = ssub.s32 %s13, 2
      %s20 = sadd.s32 %s13, 1
      %s21 = ssub.s32 %s13, %s20
      %p22 = scmp.eq.s32.totalorder %s21, 0
      %s24 = sadd.s32 %s23, 1
      %s25 = scalar_select %p22, %s23, %s24
      %p28 = pneg %p22
      %p29 = scmp.eq.s32.totalorder %s13, 1
      %p30 = por %p28, %p29
      %p31 = scmp.ne.s32.totalorder %s23, %s26
      %p32 = scmp.eq.s32.totalorder %s13, 0
      %p33 = por %p31, %p32
      %p34 = scmp.ne.s32.totalorder %s23, %s26
      %p35 = scmp.eq.s32.totalorder %s18, 1
      %p36 = por %p34, %p35
      %p37 = scmp.ne.s32.totalorder %s26, %s27
      %p38 = scmp.eq.s32.totalorder %s18, 0
      %p39 = por %p37, %p38
      %p40 = scmp.ne.s32.totalorder %s26, %s27
      %p41 = scmp.eq.s32.totalorder %s19, 1
      %p42 = por %p40, %p41
      %p44 = scmp.ne.s32.totalorder %s27, %s43
      %p45 = scmp.eq.s32.totalorder %s19, 0
      %p46 = por %p44, %p45
      %s48 = sadd.s32 %s47, 1
      %p51 = scmp.eq.s32.totalorder %s13, 1
      %p52 = scmp.ne.s32.totalorder %s47, %s49
      %p53 = scmp.eq.s32.totalorder %s13, 0
      %p54 = por %p52, %p53
      %p55 = scmp.ne.s32.totalorder %s47, %s49
      %p56 = scmp.eq.s32.totalorder %s18, 1
      %p57 = por %p55, %p56
      %p58 = scmp.ne.s32.totalorder %s49, %s50
      %p59 = scmp.eq.s32.totalorder %s18, 0
      %p60 = por %p58, %p59
      %p61 = scmp.ne.s32.totalorder %s49, %s50
      %p62 = scmp.eq.s32.totalorder %s19, 1
      %p63 = por %p61, %p62
      %p65 = scmp.ne.s32.totalorder %s50, %s64
      %p66 = scmp.eq.s32.totalorder %s19, 0
      %p67 = por %p65, %p66
      %s69 = sadd.s32 %s68, 1
      %p72 = scmp.eq.s32.totalorder %s13, 1
      %p73 = scmp.ne.s32.totalorder %s68, %s70
      %p74 = scmp.eq.s32.totalorder %s13, 0
      %p75 = por %p73, %p74
      %p76 = scmp.ne.s32.totalorder %s68, %s70
      %p77 = scmp.eq.s32.totalorder %s18, 1
      %p78 = por %p76, %p77
      %p79 = scmp.ne.s32.totalorder %s70, %s71
      %p80 = scmp.eq.s32.totalorder %s18, 0
      %p81 = por %p79, %p80
      %p82 = scmp.ne.s32.totalorder %s70, %s71
      %p83 = scmp.eq.s32.totalorder %s19, 1
      %p84 = por %p82, %p83
      %p86 = scmp.ne.s32.totalorder %s71, %s85
      %p87 = scmp.eq.s32.totalorder %s19, 0
      %p88 = por %p86, %p87
      %s90 = sadd.s32 %s89, 1
      %p93 = scmp.eq.s32.totalorder %s13, 1
      %p94 = scmp.ne.s32.totalorder %s89, %s91
      %p95 = scmp.eq.s32.totalorder %s13, 0
      %p96 = por %p94, %p95
      %p97 = scmp.ne.s32.totalorder %s89, %s91
      %p98 = scmp.eq.s32.totalorder %s18, 1
      %p99 = por %p97, %p98
      %p100 = scmp.ne.s32.totalorder %s91, %s92
      %p101 = scmp.eq.s32.totalorder %s18, 0
      %p102 = por %p100, %p101
      %p103 = scmp.ne.s32.totalorder %s91, %s92
      %p104 = scmp.eq.s32.totalorder %s19, 1
      %p105 = por %p103, %p104
      %p107 = scmp.ne.s32.totalorder %s92, %s106
      %p108 = scmp.eq.s32.totalorder %s19, 0
      %p109 = por %p107, %p108
      %s111 = sadd.s32 %s110, 1
      %p114 = scmp.eq.s32.totalorder %s13, 1
      %p115 = scmp.ne.s32.totalorder %s110, %s112
      %p116 = scmp.eq.s32.totalorder %s13, 0
      %p117 = por %p115, %p116
      %p118 = scmp.ne.s32.totalorder %s110, %s112
      %p119 = scmp.eq.s32.totalorder %s18, 1
      %p120 = por %p118, %p119
      %p121 = scmp.ne.s32.totalorder %s112, %s113
      %p122 = scmp.eq.s32.totalorder %s18, 0
      %p123 = por %p121, %p122
      %p124 = scmp.ne.s32.totalorder %s112, %s113
      %p125 = scmp.eq.s32.totalorder %s19, 1
      %p126 = por %p124, %p125
      %p128 = scmp.ne.s32.totalorder %s113, %s127
      %p129 = scmp.eq.s32.totalorder %s19, 0
      %p130 = por %p128, %p129
      %s132 = sadd.s32 %s131, 1
      %p135 = scmp.eq.s32.totalorder %s13, 1
      %p136 = scmp.ne.s32.totalorder %s131, %s133
      %p137 = scmp.eq.s32.totalorder %s13, 0
      %p138 = por %p136, %p137
      %p139 = scmp.ne.s32.totalorder %s131, %s133
      %p140 = scmp.eq.s32.totalorder %s18, 1
      %p141 = por %p139, %p140
      %p142 = scmp.ne.s32.totalorder %s133, %s134
      %p143 = scmp.eq.s32.totalorder %s18, 0
      %p144 = por %p142, %p143
      %p145 = scmp.ne.s32.totalorder %s133, %s134
      %p146 = scmp.eq.s32.totalorder %s19, 1
      %p147 = por %p145, %p146
      %p149 = scmp.ne.s32.totalorder %s134, %s148
      %p150 = scmp.eq.s32.totalorder %s19, 0
      %p151 = por %p149, %p150
      %s153 = sadd.s32 %s152, 1
      %p156 = scmp.eq.s32.totalorder %s13, 1
      %p157 = scmp.ne.s32.totalorder %s152, %s154
      %p158 = scmp.eq.s32.totalorder %s13, 0
      %p159 = por %p157, %p158
      %p160 = scmp.ne.s32.totalorder %s152, %s154
      %p161 = scmp.eq.s32.totalorder %s18, 1
      %p162 = por %p160, %p161
      %p163 = scmp.ne.s32.totalorder %s154, %s155
      %p164 = scmp.eq.s32.totalorder %s18, 0
      %p165 = por %p163, %p164
      %p166 = scmp.ne.s32.totalorder %s154, %s155
      %p167 = scmp.eq.s32.totalorder %s19, 1
      %p168 = por %p166, %p167
      %p170 = scmp.ne.s32.totalorder %s155, %s169
      %p171 = scmp.eq.s32.totalorder %s19, 0
      %p172 = por %p170, %p171
      %s173 = ssub.s32 %s13, %s20
      %p174 = scmp.eq.s32.totalorder %s173, 0
      %s176 = sadd.s32 %s175, 1
      %s177 = scalar_select %p174, %s175, %s176
      %p180 = pneg %p174
      %p181 = scmp.eq.s32.totalorder %s13, 1
      %p182 = por %p180, %p181
      %p183 = scmp.ne.s32.totalorder %s175, %s178
      %p184 = scmp.eq.s32.totalorder %s13, 0
      %p185 = por %p183, %p184
      %p186 = scmp.ne.s32.totalorder %s175, %s178
      %p187 = scmp.eq.s32.totalorder %s18, 1
      %p188 = por %p186, %p187
      %p189 = scmp.ne.s32.totalorder %s178, %s179
      %p190 = scmp.eq.s32.totalorder %s18, 0
      %p191 = por %p189, %p190
      %p192 = scmp.ne.s32.totalorder %s178, %s179
      %p193 = scmp.eq.s32.totalorder %s19, 1
      %p194 = por %p192, %p193
      %p196 = scmp.ne.s32.totalorder %s179, %s195
      %p197 = scmp.eq.s32.totalorder %s19, 0
      %p198 = por %p196, %p197
      %p199 = scmp.le.s32.totalorder 1, %s13
      %p200 = scmp.lt.s32.totalorder %s13, 3
      %p201 = pnand %p199, %p200
      %p202 = pneg %p201
      // Predicated region
      $region9: #{basic_classifier_forward.1} parent=5 // pred_check
        _
      $region10: #{basic_classifier_forward.1} parent=5 // pred_check_branch
        %204 = sbr.rel (%p201) target = $region12
      $region11: #{basic_classifier_forward.1} parent=5 // pred_region
        %s205 = ssub.s32 %s13, 1
        // Predicated region
        $region13: #{basic_classifier_forward.1} parent=11 // pred_check
          %p206 = pneg %p60
        $region14: #{basic_classifier_forward.1} parent=11 // pred_check_branch
          %208 = sbr.rel (%p206) target = $region16
        $region15: #{basic_classifier_forward.1} parent=11 // pred_region
          _
        $region16: #{basic_classifier_forward.1} parent=11 // pred_fallthru
          _
        // Predicated region
        $region17: #{basic_classifier_forward.1} parent=11 // pred_check
          %p209 = pneg %p81
        $region18: #{basic_classifier_forward.1} parent=11 // pred_check_branch
          %211 = sbr.rel (%p209) target = $region20
        $region19: #{basic_classifier_forward.1} parent=11 // pred_region
          _
        $region20: #{basic_classifier_forward.1} parent=11 // pred_fallthru
          _
        // Predicated region
        $region21: #{basic_classifier_forward.1} parent=11 // pred_check
          %p212 = pneg %p102
        $region22: #{basic_classifier_forward.1} parent=11 // pred_check_branch
          %214 = sbr.rel (%p212) target = $region24
        $region23: #{basic_classifier_forward.1} parent=11 // pred_region
          _
        $region24: #{basic_classifier_forward.1} parent=11 // pred_fallthru
          _
        // Predicated region
        $region25: #{basic_classifier_forward.1} parent=11 // pred_check
          %p215 = pneg %p123
        $region26: #{basic_classifier_forward.1} parent=11 // pred_check_branch
          %217 = sbr.rel (%p215) target = $region28
        $region27: #{basic_classifier_forward.1} parent=11 // pred_region
          _
        $region28: #{basic_classifier_forward.1} parent=11 // pred_fallthru
          _
        // Predicated region
        $region29: #{basic_classifier_forward.1} parent=11 // pred_check
          %p218 = pneg %p144
        $region30: #{basic_classifier_forward.1} parent=11 // pred_check_branch
          %220 = sbr.rel (%p218) target = $region32
        $region31: #{basic_classifier_forward.1} parent=11 // pred_region
          _
        $region32: #{basic_classifier_forward.1} parent=11 // pred_fallthru
          _
        // Predicated region
        $region33: #{basic_classifier_forward.1} parent=11 // pred_check
          %p221 = pneg %p165
        $region34: #{basic_classifier_forward.1} parent=11 // pred_check_branch
          %223 = sbr.rel (%p221) target = $region36
        $region35: #{basic_classifier_forward.1} parent=11 // pred_region
          _
        $region36: #{basic_classifier_forward.1} parent=11 // pred_fallthru
          _
      $region12: #{basic_classifier_forward.1} parent=5 // pred_fallthru
        _
      %p224 = scmp.lt.s32.totalorder %s13, 2
      // Predicated region
      $region37: #{basic_classifier_forward.1} parent=5 // pred_check
        %p225 = pneg %p224
      $region38: #{basic_classifier_forward.1} parent=5 // pred_check_branch
        %227 = sbr.rel (%p225) target = $region40
      $region39: #{basic_classifier_forward.1} parent=5 // pred_region
        // Predicated region
        $region41: #{basic_classifier_forward.1} parent=39 // pred_check
          %p228 = pneg %p33
        $region42: #{basic_classifier_forward.1} parent=39 // pred_check_branch
          %230 = sbr.rel (%p228) target = $region44
        $region43: #{basic_classifier_forward.1} parent=39 // pred_region
          %s231 = smul.u32 2, %s13
          %s232 = ssub.s32 3, %s231
          %p233 = scmp.lt.s32.totalorder %s232, 2
          %s234 = scalar_select %p233, %s232, 2
          %s235 = smul.u32 128, %s234
          %p236 = scmp.lt.s32.totalorder %s231, 2
          %s237 = scalar_select %p236, %s231, 2
          %s238 = smul.addr %s237, 8
          %s239 = scalar_lea.vmem %s0, %s238
          %s240 = smul.u32 2, %s13
          %s241 = ssub.s32 3, %s240
          %p242 = scmp.lt.s32.totalorder %s241, 2
          %s243 = scalar_select %p242, %s241, 2
          %s244 = smul.u32 128, %s243
        $region44: #{basic_classifier_forward.1} parent=39 // pred_fallthru
          _
      $region40: #{basic_classifier_forward.1} parent=5 // pred_fallthru
        _
      %p245 = scmp.le.s32.totalorder 1, %s13
      %p246 = scmp.lt.s32.totalorder %s13, 3
      %p247 = pnand %p245, %p246
      %p248 = pneg %p247
      // Predicated region
      $region45: #{basic_classifier_forward.1} parent=5 // pred_check
        _
      $region46: #{basic_classifier_forward.1} parent=5 // pred_check_branch
        %250 = sbr.rel (%p247) target = $region48
      $region47: #{basic_classifier_forward.1} parent=5 // pred_region
        %s251 = ssub.s32 %s13, 1
        %s252 = smul.u32 2, %s18
        %s253 = ssub.s32 3, %s252
        %p254 = scmp.lt.s32.totalorder %s253, 2
        %s255 = scalar_select %p254, %s253, 2
        %s256 = smul.u32 128, %s255
        %p257 = scmp.lt.s32.totalorder %s252, 2
        %s258 = scalar_select %p257, %s252, 2
        %s259 = smul.addr %s258, 8
        %s260 = scalar_lea.vmem %s0, %s259
        %p261 = pneg %p39
        %p262 = pneg %p36
        %p263 = pneg %p60
        %p264 = pneg %p57
        %p265 = pneg %p81
        %p266 = pneg %p78
        %p267 = pneg %p102
        %p268 = pneg %p99
        %p269 = pneg %p123
        %p270 = pneg %p120
        %p271 = pneg %p144
        %p272 = pneg %p141
        %p273 = pneg %p165
        %p274 = pneg %p162
        %p275 = pneg %p191
        %p276 = pneg %p188
        %s277 = sand.u32 %s178, 1
        %s278 = sand.u32 %s178, 1
        %s279 = smul.addr %s278, 16
        %s280 = scalar_lea.vmem [#allocation2], %s279
        %s281 = smul.u32 2, %s18
        %s282 = ssub.s32 3, %s281
        %p283 = scmp.lt.s32.totalorder %s282, 2
        %s284 = scalar_select %p283, %s282, 2
        %s285 = smul.u32 128, %s284
        %p286 = scmp.lt.s32.totalorder %s281, 2
        %s287 = scalar_select %p286, %s281, 2
        %s288 = smul.addr %s287, 8
        %s289 = scalar_lea.vmem %s0, %s288
        %s290 = smul.u32 2, %s18
        %s291 = ssub.s32 3, %s290
        %p292 = scmp.lt.s32.totalorder %s291, 2
        %s293 = scalar_select %p292, %s291, 2
        %s294 = smul.u32 128, %s293
        %s295 = smul.u32 2, %s18
        %s296 = ssub.s32 3, %s295
        %p297 = scmp.lt.s32.totalorder %s296, 2
        %s298 = scalar_select %p297, %s296, 2
        %s299 = smul.u32 128, %s298
        %v301 = vld [vmem:[%s289] sm:$0xff]
        %v302 = vld [vmem:[%s289 + $0x8] sm:$0xff]
        %v303 = vpack.c.bf16 %v302, %v301
        %v304 = vld [vmem:[%s1] sm:$0xff]
        %v305 = vld [vmem:[%s1 + $0x8] sm:$0xff]
        %v306 = vld [vmem:[%s1 + $0x10] sm:$0xff]
        %v307 = vld [vmem:[%s1 + $0x18] sm:$0xff]
        %v308 = vpack.c.bf16 %v305, %v304
        %v309 = vpack.c.bf16 %v307, %v306
        %v310 = vld [vmem:[%s2] sm:$0x1]
        %v312 = vlaneseq
        %v313 = vshrl.u32 %v312, 7
        %v314 = vsub.s32 0, %v313
        %v315 = vrot.slane %v310, %v314
        %vm317 = vcmask 261120
        %v319 = vsel %vm317, %v303, 0
        %321 = vmatprep.subr.bf16.mxu0 0
        %322 = vmatpush1.bf16.msra.mxu0 %v308
        %323 = vmatprep.subr.bf16.mxu0 0
        %324 = vmatpush1.bf16.msra.mxu0 %v309
        %325 = vmatprep.subr.bf16.mxu0 0
        %326 = vmatpush1.bf16.msra.mxu0 0
        %327 = vmatprep.subr.bf16.mxu0 0
        %328 = vmatpush1.bf16.msra.mxu0 0
        %329 = vmatprep.subr.bf16.mxu0 0
        %330 = vmatpush1.bf16.msra.mxu0 0
        %331 = vmatprep.subr.bf16.mxu0 0
        %332 = vmatpush1.bf16.msra.mxu0 0
        %333 = vmatprep.subr.bf16.mxu0 0
        %334 = vmatpush1.bf16.msra.mxu0 0
        %335 = vmatprep.subr.bf16.mxu0 0
        %336 = vmatpush1.bf16.msra.mxu0 0
        %337 = vmatprep.subr.bf16.mxu0 0
        %338 = vmatpush1.bf16.msra.mxu0 0
        %339 = vmatprep.subr.bf16.mxu0 0
        %340 = vmatpush1.bf16.msra.mxu0 0
        %341 = vmatprep.subr.bf16.mxu0 0
        %342 = vmatpush1.bf16.msra.mxu0 0
        %343 = vmatprep.subr.bf16.mxu0 0
        %344 = vmatpush1.bf16.msra.mxu0 0
        %345 = vmatprep.subr.bf16.mxu0 0
        %346 = vmatpush1.bf16.msra.mxu0 0
        %347 = vmatprep.subr.bf16.mxu0 0
        %348 = vmatpush1.bf16.msra.mxu0 0
        %349 = vmatprep.subr.bf16.mxu0 0
        %350 = vmatpush1.bf16.msra.mxu0 0
        %351 = vmatprep.subr.bf16.mxu0 0
        %352 = vmatpush1.bf16.msra.mxu0 0
        %353 = vmatprep.mubr.bf16.mxu0 0
        %354 = vmatmul.mubr.bf16.gmra.mrb[0].mxu0 %v319
        %v355 = vpop.f32.mrb[0].mxu0
        %v356 = vadd.f32 %v315, %v355
        %v357 = vpop.f32.mrb[0].mxu0
        %v358 = vpop.f32.mrb[0].mxu0
        %v359 = vadd.f32 %v315, %v358
        %v360 = vpop.f32.mrb[0].mxu0
        %361 = vdwg.mxu0
        %v362 = vmax.f32 %v356, 0.0
        %v363 = vmax.f32 %v359, 0.0
        %v364 = vpack.c.bf16 %v363, %v362
        %v365 = vld [vmem:[%s3] sm:$0xff]
        %v366 = vld [vmem:[%s3 + $0x8] sm:$0xff]
        %v367 = vld [vmem:[%s3 + $0x10] sm:$0xff]
        %v368 = vld [vmem:[%s3 + $0x18] sm:$0xff]
        %v369 = vld [vmem:[%s3 + $0x20] sm:$0xff]
        %v370 = vld [vmem:[%s3 + $0x28] sm:$0xff]
        %v371 = vld [vmem:[%s3 + $0x30] sm:$0xff]
        %v372 = vld [vmem:[%s3 + $0x38] sm:$0xff]
        %v373 = vld [vmem:[%s3 + $0x40] sm:$0xff]
        %v374 = vld [vmem:[%s3 + $0x48] sm:$0xff]
        %v375 = vld [vmem:[%s3 + $0x50] sm:$0xff]
        %v376 = vld [vmem:[%s3 + $0x58] sm:$0xff]
        %v377 = vld [vmem:[%s3 + $0x60] sm:$0xff]
        %v378 = vld [vmem:[%s3 + $0x68] sm:$0xff]
        %v379 = vld [vmem:[%s3 + $0x70] sm:$0xff]
        %v380 = vld [vmem:[%s3 + $0x78] sm:$0xff]
        %v381 = vpack.c.bf16 %v366, %v365
        %v382 = vpack.c.bf16 %v368, %v367
        %v383 = vpack.c.bf16 %v370, %v369
        %v384 = vpack.c.bf16 %v372, %v371
        %v385 = vpack.c.bf16 %v374, %v373
        %v386 = vpack.c.bf16 %v376, %v375
        %v387 = vpack.c.bf16 %v378, %v377
        %v388 = vpack.c.bf16 %v380, %v379
        %v389 = vld [vmem:[%s4] sm:$0x1]
        %v391 = vlaneseq
        %v392 = vshrl.u32 %v391, 7
        %v393 = vsub.s32 0, %v392
        %v394 = vrot.slane %v389, %v393
        %396 = vmatprep.subr.bf16.mxu0 0
        %397 = vmatpush1.bf16.msra.mxu0 %v381
        %398 = vmatprep.subr.bf16.mxu0 0
        %399 = vmatpush1.bf16.msra.mxu0 %v382
        %400 = vmatprep.subr.bf16.mxu0 0
        %401 = vmatpush1.bf16.msra.mxu0 %v383
        %402 = vmatprep.subr.bf16.mxu0 0
        %403 = vmatpush1.bf16.msra.mxu0 %v384
        %404 = vmatprep.subr.bf16.mxu0 0
        %405 = vmatpush1.bf16.msra.mxu0 %v385
        %406 = vmatprep.subr.bf16.mxu0 0
        %407 = vmatpush1.bf16.msra.mxu0 %v386
        %408 = vmatprep.subr.bf16.mxu0 0
        %409 = vmatpush1.bf16.msra.mxu0 %v387
        %410 = vmatprep.subr.bf16.mxu0 0
        %411 = vmatpush1.bf16.msra.mxu0 %v388
        %412 = vmatprep.subr.bf16.mxu0 0
        %413 = vmatpush1.bf16.msra.mxu0 0
        %414 = vmatprep.subr.bf16.mxu0 0
        %415 = vmatpush1.bf16.msra.mxu0 0
        %416 = vmatprep.subr.bf16.mxu0 0
        %417 = vmatpush1.bf16.msra.mxu0 0
        %418 = vmatprep.subr.bf16.mxu0 0
        %419 = vmatpush1.bf16.msra.mxu0 0
        %420 = vmatprep.subr.bf16.mxu0 0
        %421 = vmatpush1.bf16.msra.mxu0 0
        %422 = vmatprep.subr.bf16.mxu0 0
        %423 = vmatpush1.bf16.msra.mxu0 0
        %424 = vmatprep.subr.bf16.mxu0 0
        %425 = vmatpush1.bf16.msra.mxu0 0
        %426 = vmatprep.subr.bf16.mxu0 0
        %427 = vmatpush1.bf16.msra.mxu0 0
        %428 = vmatprep.mubr.bf16.mxu0 0
        %429 = vmatmul.mubr.bf16.gmra.mrb[0].mxu0 %v364
        %v430 = vpop.f32.mrb[0].mxu0
        %v431 = vadd.f32 %v394, %v430
        %v432 = vpop.f32.mrb[0].mxu0
        %v433 = vpop.f32.mrb[0].mxu0
        %v434 = vadd.f32 %v394, %v433
        %v435 = vpop.f32.mrb[0].mxu0
        %436 = vdwg.mxu0
        %v437 = vmax.f32 %v431, 0.0
        %v438 = vmax.f32 %v434, 0.0
        %v439 = vpack.c.bf16 %v438, %v437
        %v440 = vld [vmem:[%s5] sm:$0xff]
        %v441 = vld [vmem:[%s5 + $0x8] sm:$0xff]
        %v442 = vld [vmem:[%s5 + $0x10] sm:$0xff]
        %v443 = vld [vmem:[%s5 + $0x18] sm:$0xff]
        %v444 = vld [vmem:[%s5 + $0x20] sm:$0xff]
        %v445 = vld [vmem:[%s5 + $0x28] sm:$0xff]
        %v446 = vld [vmem:[%s5 + $0x30] sm:$0xff]
        %v447 = vld [vmem:[%s5 + $0x38] sm:$0xff]
        %v448 = vpack.c.bf16 %v441, %v440
        %v449 = vpack.c.bf16 %v443, %v442
        %v450 = vpack.c.bf16 %v445, %v444
        %v451 = vpack.c.bf16 %v447, %v446
        %v452 = vld [vmem:[%s6] sm:$0x1]
        %v454 = vlaneseq
        %v455 = vshrl.u32 %v454, 7
        %v456 = vsub.s32 0, %v455
        %v457 = vrot.slane %v452, %v456
        %vm459 = vcmask 523264
        %v461 = vsel %vm459, %v439, 0
        %463 = vmatprep.subr.bf16.mxu0 0
        %464 = vmatpush1.bf16.msra.mxu0 %v448
        %465 = vmatprep.subr.bf16.mxu0 0
        %466 = vmatpush1.bf16.msra.mxu0 %v449
        %467 = vmatprep.subr.bf16.mxu0 0
        %468 = vmatpush1.bf16.msra.mxu0 %v450
        %469 = vmatprep.subr.bf16.mxu0 0
        %470 = vmatpush1.bf16.msra.mxu0 %v451
        %471 = vmatprep.subr.bf16.mxu0 0
        %472 = vmatpush1.bf16.msra.mxu0 0
        %473 = vmatprep.subr.bf16.mxu0 0
        %474 = vmatpush1.bf16.msra.mxu0 0
        %475 = vmatprep.subr.bf16.mxu0 0
        %476 = vmatpush1.bf16.msra.mxu0 0
        %477 = vmatprep.subr.bf16.mxu0 0
        %478 = vmatpush1.bf16.msra.mxu0 0
        %479 = vmatprep.subr.bf16.mxu0 0
        %480 = vmatpush1.bf16.msra.mxu0 0
        %481 = vmatprep.subr.bf16.mxu0 0
        %482 = vmatpush1.bf16.msra.mxu0 0
        %483 = vmatprep.subr.bf16.mxu0 0
        %484 = vmatpush1.bf16.msra.mxu0 0
        %485 = vmatprep.subr.bf16.mxu0 0
        %486 = vmatpush1.bf16.msra.mxu0 0
        %487 = vmatprep.subr.bf16.mxu0 0
        %488 = vmatpush1.bf16.msra.mxu0 0
        %489 = vmatprep.subr.bf16.mxu0 0
        %490 = vmatpush1.bf16.msra.mxu0 0
        %491 = vmatprep.subr.bf16.mxu0 0
        %492 = vmatpush1.bf16.msra.mxu0 0
        %493 = vmatprep.subr.bf16.mxu0 0
        %494 = vmatpush1.bf16.msra.mxu0 0
        %495 = vmatprep.mubr.bf16.mxu0 0
        %496 = vmatmul.mubr.bf16.gmra.mrb[0].mxu0 %v461
        %v497 = vpop.f32.mrb[0].mxu0
        %v498 = vadd.f32 %v457, %v497
        %v499 = vpop.f32.mrb[0].mxu0
        %v500 = vpop.f32.mrb[0].mxu0
        %v501 = vadd.f32 %v457, %v500
        %v502 = vpop.f32.mrb[0].mxu0
        %503 = vdwg.mxu0
        %vm504 = vcmask 80896
        %505 = vst.msk [vmem:[%s280] sm:$0xff] %vm504, %v498
        %506 = vst.msk [vmem:[%s280 + $0x8] sm:$0xff] %vm504, %v501
        %s507 = sand.u32 %s178, 1
        %s508 = sand.u32 %s178, 1
        %s509 = smul.addr %s508, 16
        %s510 = scalar_lea.vmem [#allocation2], %s509
        // Predicated region
        $region49: #{basic_classifier_forward.1} parent=47 // pred_check
          %p511 = pneg %p188
        $region50: #{basic_classifier_forward.1} parent=47 // pred_check_branch
          %513 = sbr.rel (%p511) target = $region52
        $region51: #{basic_classifier_forward.1} parent=47 // pred_region
          %s514 = smul.u32 2, %s18
          %s515 = ssub.s32 3, %s514
          %p516 = scmp.lt.s32.totalorder %s515, 2
          %s517 = scalar_select %p516, %s515, 2
          %s518 = smul.u32 128, %s517
          %p519 = scmp.ne.s32.totalorder 0, %s518
          %s520 = smul.addr %s514, 8
          %s521 = scalar_lea.vmem %s7, %s520
          // Predicated region
          $region53: #{basic_classifier_forward.1} parent=51 // pred_check
            %p522 = pneg %p519
          $region54: #{basic_classifier_forward.1} parent=51 // pred_check_branch
            %524 = sbr.rel (%p522) target = $region56
          $region55: #{basic_classifier_forward.1} parent=51 // pred_region
            // Predicated region
            $region57: #{basic_classifier_forward.1} parent=55 // pred_check
              _
            $region58: #{basic_classifier_forward.1} parent=55 // pred_check_branch
              %526 = sbr.rel (0) target = $region60
            $region59: #{basic_classifier_forward.1} parent=55 // pred_region
              // Predicated region
              $region79: #{basic_classifier_forward.1} parent=59 // pred_check
                _
              $region80: #{basic_classifier_forward.1} parent=59 // pred_check_branch
                %577 = sbr.rel (0) target = $region82
              $region81: #{basic_classifier_forward.1} parent=59 // pred_region
                %s578 = sshrl.u32 %s517, 1
                // While loop
                $region83: #{basic_classifier_forward.1} parent=81 // loop_pre_header
                  _
                $region84: #{basic_classifier_forward.1} parent=81 // loop_header
                  %s580 = sphi 0, %s582
                  %p581 = scmp.ge.s32.totalorder %s580, %s578
                  %s585 = sphi 0, %s594
                  %s586 = sphi %s510, %s597
                  %s587 = sphi %s521, %s598
                $region85: #{basic_classifier_forward.1} parent=81 // loop_header_branch
                  %584 = sbr.rel (%p581) target = $region89
                $region86: #{basic_classifier_forward.1} parent=81 // loop_body
                  %v588 = vld [vmem:[%s586] sm:$0xff]
                  %589 = vst [vmem:[%s587] sm:$0xff] %v588
                  %v590 = vld [vmem:[%s586 + $0x8] sm:$0xff]
                  %591 = vst [vmem:[%s587 + $0x8] sm:$0xff] %v590
                  %s592 = sadd.s32 1, %s585
                  %p593 = scmp.ge.s32.totalorder %s592, %s578
                  %s594 = scalar_select %p593, 0, %s592
                  %s595 = smul.u32 %s594, 16
                  %s596 = smul.u32 %s594, 16
                  %s597 = scalar_lea.vmem %s510, %s595 [#allocation2]
                  %s598 = scalar_lea.vmem %s521, %s596
                $region87: #{basic_classifier_forward.1} parent=81 // loop_footer
                  %s582 = sadd.s32 %s580, 1
                $region88: #{basic_classifier_forward.1} parent=81 // loop_footer_branch
                  %579 = sbr.rel target = $region84
                $region89: #{basic_classifier_forward.1} parent=81 // loop_exit
                  _
                %s599 = sshrl.u32 %s517, 1
                %s600 = sand.u32 %s517, 1
                %s601 = smul.u32 %s599, 2
                %s602 = smul.u32 8, %s601
                %s603 = scalar_lea.vmem %s510, %s602 [#allocation2]
                %s604 = smul.u32 8, %s601
                %s605 = scalar_lea.vmem %s521, %s604
                // While loop
                $region90: #{basic_classifier_forward.1} parent=81 // loop_pre_header
                  _
                $region91: #{basic_classifier_forward.1} parent=81 // loop_header
                  %s607 = sphi 0, %s609
                  %p608 = scmp.ge.s32.totalorder %s607, %s600
                  %s612 = sphi 0, %s619
                  %s613 = sphi %s603, %s622
                  %s614 = sphi %s605, %s623
                $region92: #{basic_classifier_forward.1} parent=81 // loop_header_branch
                  %611 = sbr.rel (%p608) target = $region96
                $region93: #{basic_classifier_forward.1} parent=81 // loop_body
                  %v615 = vld [vmem:[%s613] sm:$0xff]
                  %616 = vst [vmem:[%s614] sm:$0xff] %v615
                  %s617 = sadd.s32 1, %s612
                  %p618 = scmp.ge.s32.totalorder %s617, %s600
                  %s619 = scalar_select %p618, 0, %s617
                  %s620 = smul.u32 %s619, 8
                  %s621 = smul.u32 %s619, 8
                  %s622 = scalar_lea.vmem %s603, %s620 [#allocation2]
                  %s623 = scalar_lea.vmem %s605, %s621
                $region94: #{basic_classifier_forward.1} parent=81 // loop_footer
                  %s609 = sadd.s32 %s607, 1
                $region95: #{basic_classifier_forward.1} parent=81 // loop_footer_branch
                  %606 = sbr.rel target = $region91
                $region96: #{basic_classifier_forward.1} parent=81 // loop_exit
                  _
              $region82: #{basic_classifier_forward.1} parent=59 // pred_fallthru
                _
              // Predicated region
              $region97: #{basic_classifier_forward.1} parent=59 // pred_check
                _
              $region98: #{basic_classifier_forward.1} parent=59 // pred_check_branch
                %625 = sbr.rel target = $region100
              $region99: #{basic_classifier_forward.1} parent=59 // pred_region
                _
              $region100: #{basic_classifier_forward.1} parent=59 // pred_fallthru
                _
            $region60: #{basic_classifier_forward.1} parent=55 // pred_fallthru
              _
            // Predicated region
            $region61: #{basic_classifier_forward.1} parent=55 // pred_check
              _
            $region62: #{basic_classifier_forward.1} parent=55 // pred_check_branch
              %528 = sbr.rel target = $region64
            $region63: #{basic_classifier_forward.1} parent=55 // pred_region
              %s530 = sshrl.u32 %s517, 1
              // While loop
              $region65: #{basic_classifier_forward.1} parent=63 // loop_pre_header
                _
              $region66: #{basic_classifier_forward.1} parent=63 // loop_header
                %s532 = sphi 0, %s534
                %p533 = scmp.ge.s32.totalorder %s532, %s530
                %s537 = sphi 0, %s546
                %s538 = sphi %s510, %s549
                %s539 = sphi %s521, %s550
              $region67: #{basic_classifier_forward.1} parent=63 // loop_header_branch
                %536 = sbr.rel (%p533) target = $region71
              $region68: #{basic_classifier_forward.1} parent=63 // loop_body
                %v540 = vld [vmem:[%s538] sm:$0xff]
                %541 = vst [vmem:[%s539] sm:$0xff] %v540
                %v542 = vld [vmem:[%s538 + $0x8] sm:$0xff]
                %543 = vst [vmem:[%s539 + $0x8] sm:$0xff] %v542
                %s544 = sadd.s32 1, %s537
                %p545 = scmp.ge.s32.totalorder %s544, %s530
                %s546 = scalar_select %p545, 0, %s544
                %s547 = smul.u32 %s546, 16
                %s548 = smul.u32 %s546, 16
                %s549 = scalar_lea.vmem %s510, %s547 [#allocation2]
                %s550 = scalar_lea.vmem %s521, %s548
              $region69: #{basic_classifier_forward.1} parent=63 // loop_footer
                %s534 = sadd.s32 %s532, 1
              $region70: #{basic_classifier_forward.1} parent=63 // loop_footer_branch
                %531 = sbr.rel target = $region66
              $region71: #{basic_classifier_forward.1} parent=63 // loop_exit
                _
              %s551 = sshrl.u32 %s517, 1
              %s552 = sand.u32 %s517, 1
              %s553 = smul.u32 %s551, 2
              %s554 = smul.u32 8, %s553
              %s555 = scalar_lea.vmem %s510, %s554 [#allocation2]
              %s556 = smul.u32 8, %s553
              %s557 = scalar_lea.vmem %s521, %s556
              // While loop
              $region72: #{basic_classifier_forward.1} parent=63 // loop_pre_header
                _
              $region73: #{basic_classifier_forward.1} parent=63 // loop_header
                %s559 = sphi 0, %s561
                %p560 = scmp.ge.s32.totalorder %s559, %s552
                %s564 = sphi 0, %s571
                %s565 = sphi %s555, %s574
                %s566 = sphi %s557, %s575
              $region74: #{basic_classifier_forward.1} parent=63 // loop_header_branch
                %563 = sbr.rel (%p560) target = $region78
              $region75: #{basic_classifier_forward.1} parent=63 // loop_body
                %v567 = vld [vmem:[%s565] sm:$0xff]
                %568 = vst [vmem:[%s566] sm:$0xff] %v567
                %s569 = sadd.s32 1, %s564
                %p570 = scmp.ge.s32.totalorder %s569, %s552
                %s571 = scalar_select %p570, 0, %s569
                %s572 = smul.u32 %s571, 8
                %s573 = smul.u32 %s571, 8
                %s574 = scalar_lea.vmem %s555, %s572 [#allocation2]
                %s575 = scalar_lea.vmem %s557, %s573
              $region76: #{basic_classifier_forward.1} parent=63 // loop_footer
                %s561 = sadd.s32 %s559, 1
              $region77: #{basic_classifier_forward.1} parent=63 // loop_footer_branch
                %558 = sbr.rel target = $region73
              $region78: #{basic_classifier_forward.1} parent=63 // loop_exit
                _
            $region64: #{basic_classifier_forward.1} parent=55 // pred_fallthru
              _
          $region56: #{basic_classifier_forward.1} parent=51 // pred_fallthru
            _
          %626 = vnop
        $region52: #{basic_classifier_forward.1} parent=47 // pred_fallthru
          _
      $region48: #{basic_classifier_forward.1} parent=5 // pred_fallthru
        _
      %p627 = scmp.le.s32.totalorder 2, %s13
      // Predicated region
      $region101: #{basic_classifier_forward.1} parent=5 // pred_check
        %p628 = pneg %p627
      $region102: #{basic_classifier_forward.1} parent=5 // pred_check_branch
        %630 = sbr.rel (%p628) target = $region104
      $region103: #{basic_classifier_forward.1} parent=5 // pred_region
        %s631 = ssub.s32 %s13, 2
        // Predicated region
        $region105: #{basic_classifier_forward.1} parent=103 // pred_check
          %p632 = pneg %p194
        $region106: #{basic_classifier_forward.1} parent=103 // pred_check_branch
          %634 = sbr.rel (%p632) target = $region108
        $region107: #{basic_classifier_forward.1} parent=103 // pred_region
          %s635 = sand.u32 %s179, 1
          %s636 = sand.u32 %s179, 1
          %s637 = smul.addr %s636, 16
          %s638 = scalar_lea.vmem [#allocation2], %s637
        $region108: #{basic_classifier_forward.1} parent=103 // pred_fallthru
          _
      $region104: #{basic_classifier_forward.1} parent=5 // pred_fallthru
        _
    $region6: #{basic_classifier_forward.1} parent=1 // loop_footer
      %s17 = sadd.s32 1, %s13
    $region7: #{basic_classifier_forward.1} parent=1 // loop_footer_branch
      %12 = sbr.rel target = $region3
    $region8: #{basic_classifier_forward.1} parent=1 // loop_exit
      _

</llo_original>
